<compile_context>
chip_gen: v5e
topology: v5e:2x2
jax: 0.10.0
libtpu: 0.0.40
codegen_flags: <defaults>
</compile_context>

<pallas_src>
import functools
import math

import numpy as np
import jax
import jax.numpy as jnp
from jax import lax
from jax.experimental import pallas as pl
from jax.experimental.pallas import tpu as pltpu

BN_EPS = 1e-5
NEWTON_ITERS = 8           # 7 approx-reciprocal steps + 1 exact final step
MAX_ROW_TILE = 2048        # rows per grid step (multiple of 128 and of vbs)


def _attentive_transformer_kernel(feat_ref, priors_ref, w_ref, s_ref, sb_ref,
                                  gamma_ref, beta_ref, out_ref):
    f_out = w_ref.shape[0]

    # ---- Linear (no bias); transpose absorbed into the MXU (NT matmul) ------
    # xt[o, t] = sum_i W[o, i] * feat[t, i]            -> (F_out, TB)
    xt = lax.dot_general(w_ref[...], feat_ref[...],
                         dimension_numbers=(((1,), (1,)), ((), ())),
                         preferred_element_type=jnp.float32)

    # priors^T via an identity NT matmul (MXU has slack; keeps XLU free for
    # the entmax cross-sublane reductions).
    eye = (lax.broadcasted_iota(jnp.int32, (f_out, f_out), 0) ==
           lax.broadcasted_iota(jnp.int32, (f_out, f_out), 1)).astype(jnp.float32)
    priors_t = lax.dot_general(eye, priors_ref[...],
                               dimension_numbers=(((1,), (1,)), ((), ())),
                               preferred_element_type=jnp.float32)

    # ---- Ghost BatchNorm (training-mode, biased variance) -------------------
    # One stacked reduce matmul gives E[x] and E[x^2] per virtual batch; one
    # broadcast matmul maps the statistics back to every column of the batch.
    stacked = jnp.concatenate([xt, xt * xt], axis=0)              # (2*F_out, TB)
    stats = jnp.dot(stacked, s_ref[...],
                    preferred_element_type=jnp.float32)           # (2*F_out, nvb)
    bcast = jnp.dot(stats, sb_ref[...],
                    preferred_element_type=jnp.float32)           # (2*F_out, TB)
    mean = bcast[:f_out, :]
    var = jnp.maximum(bcast[f_out:, :] - mean * mean, 0.0)
    scale = lax.rsqrt(var + BN_EPS) * gamma_ref[...]              # fused BN affine
    x = (xt - mean) * scale + beta_ref[...]

    # ---- elementwise prior multiplication -----------------------------------
    x = x * priors_t

    # ---- Entmax 1.5 along F_out (axis 0 / sublanes; batch stays on lanes) ---
    # TODO(synk): the reference entmax15 uses an exact sort-based threshold;
    # sort is not Mosaic-lowerable, so tau is found by Newton root-finding on
    # f(tau) = sum_i max(z_i - tau, 0)^2 - 1 (same root; f32-exact in practice).
    z = (x - jnp.max(x, axis=0, keepdims=True)) * 0.5             # max(z) == 0 per col
    tau = jnp.full((1, z.shape[1]), -1.0, dtype=jnp.float32)      # left bracket end

    def newton(_, tau):
        p = jnp.maximum(z - tau, 0.0)
        f = jnp.sum(p * p, axis=0, keepdims=True)
        g = jnp.sum(p, axis=0, keepdims=True)                     # g >= 1 on the path
        # f convex & decreasing; from the left the iterates climb monotonically.
        step = jnp.maximum(f - 1.0, 0.0) * pl.reciprocal(g + g, approx=True)
        return tau + step

    tau = lax.fori_loop(0, NEWTON_ITERS - 1, newton, tau, unroll=True)

    # Final correction with an exact divide and no clamp: one extra EUP op per
    # tile (free slot) removes the approximate-reciprocal overshoot bias.
    p = jnp.maximum(z - tau, 0.0)
    f = jnp.sum(p * p, axis=0, keepdims=True)
    g = jnp.sum(p, axis=0, keepdims=True)
    tau = tau + (f - 1.0) / (g + g)

    p = jnp.maximum(z - tau, 0.0)
    p = p * p
    out_ref[...] = (p / jnp.sum(p, axis=0, keepdims=True)).astype(out_ref.dtype)


@functools.lru_cache(maxsize=None)
def _avg_factors(tb, vbs):
    """Ghost-BN reduce factor S (tb, nvb; 1/vbs) and broadcast factor S_b
    (nvb, tb; ones) for one row tile — host-side numpy constants."""
    nvb = tb // vbs
    chunk = np.arange(tb) // vbs
    s = np.zeros((tb, nvb), np.float32)
    s[np.arange(tb), chunk] = 1.0 / vbs
    sb = np.zeros((nvb, tb), np.float32)
    sb[chunk, np.arange(tb)] = 1.0
    return s, sb


def _pick_row_tile(batch_padded, align, max_tile=MAX_ROW_TILE):
    """`batch_padded` is a multiple of `align` (= lcm(vbs, 128)).  Pick the
    largest tile that is a multiple of `align`, divides `batch_padded`, and
    fits `max_tile`, preferring an even number of >=2 grid steps so v7x's two
    TensorCores both get balanced work (no-op for single-TC v5e/v6e)."""
    m = batch_padded // align

    def best(pred):
        cands = [d * align for d in range(1, m + 1)
                 if m % d == 0 and d * align <= max_tile and pred(m // d)]
        return max(cands) if cands else None

    for pred in (lambda s: s >= 2 and s % 2 == 0,   # even #steps, >=2
                 lambda s: s >= 2,                   # >=2 steps
                 lambda s: True):                    # whatever fits
        t = best(pred)
        if t is not None:
            return t
    return batch_padded                              # align itself exceeds max_tile


def attentive_transformer(priors, processed_feat, weight, gamma, beta, *,
                          virtual_batch_size=32):
    """priors: (B, F_out), processed_feat: (B, F_in), weight: (F_out, F_in)."""
    B, f_in = processed_feat.shape
    f_out = weight.shape[0]
    assert priors.shape == (B, f_out)
    vbs = virtual_batch_size
    assert B % vbs == 0, "batch must be a multiple of the virtual batch size"

    align = vbs * 128 // math.gcd(vbs, 128)           # lane-dense & vbs-aligned unit
    b_pad = ((B + align - 1) // align) * align
    tb = _pick_row_tile(b_pad, align)
    nvb = tb // vbs
    grid = b_pad // tb

    feat = jnp.asarray(processed_feat, jnp.float32)
    pri = jnp.asarray(priors, jnp.float32)
    if b_pad != B:
        # Pad with whole extra virtual batches: padding starts at a vbs
        # boundary, so the BN statistics of real rows are untouched.
        feat = jnp.concatenate(
            [feat, jnp.zeros((b_pad - B, f_in), jnp.float32)], axis=0)
        pri = jnp.concatenate(
            [pri, jnp.ones((b_pad - B, f_out), jnp.float32)], axis=0)

    w = jnp.asarray(weight, jnp.float32)                      # (F_out, F_in)
    gamma_col = jnp.asarray(gamma, jnp.float32).reshape(f_out, 1)
    beta_col = jnp.asarray(beta, jnp.float32).reshape(f_out, 1)
    s_np, sb_np = _avg_factors(tb, vbs)
    s = jnp.asarray(s_np)                                     # (tb, nvb)
    sb = jnp.asarray(sb_np)                                   # (nvb, tb)

    cost = pl.CostEstimate(
        flops=int(b_pad * (2 * f_in * f_out + 2 * f_out * f_out
                           + 8 * f_out * nvb + 40 * f_out)),
        transcendentals=int(b_pad * (NEWTON_ITERS + 2)),
        bytes_accessed=int(4 * (b_pad * (f_in + 2 * f_out)
                                + 2 * tb * nvb + f_out * f_in)),
    )

    out_t = pl.pallas_call(
        _attentive_transformer_kernel,
        out_shape=jax.ShapeDtypeStruct((f_out, b_pad), jnp.float32),
        grid=(grid,),
        in_specs=[
            pl.BlockSpec((tb, f_in), lambda i: (i, 0)),      # feat, natural layout
            pl.BlockSpec((tb, f_out), lambda i: (i, 0)),     # priors, natural layout
            pl.BlockSpec((f_out, f_in), lambda i: (0, 0)),   # W (PyTorch layout)
            pl.BlockSpec((tb, nvb), lambda i: (0, 0)),       # ghost-BN reduce factor
            pl.BlockSpec((nvb, tb), lambda i: (0, 0)),       # ghost-BN broadcast factor
            pl.BlockSpec((f_out, 1), lambda i: (0, 0)),      # bn gamma (column)
            pl.BlockSpec((f_out, 1), lambda i: (0, 0)),      # bn beta  (column)
        ],
        out_specs=pl.BlockSpec((f_out, tb), lambda i: (0, i)),
        compiler_params=pltpu.CompilerParams(
            dimension_semantics=("parallel",)),
        cost_estimate=cost,
    )(feat, pri, w, s, sb, gamma_col, beta_col)

    return out_t[:, :B].T                                     # (B, F_out)


# ----------------------------- pure-JAX reference ----------------------------
def _entmax15_ref(x):
    """Exact sort-based Entmax 1.5 (matches entmax.Entmax15 forward)."""
    x = (x - jnp.max(x, axis=-1, keepdims=True)) / 2.0
    d = x.shape[-1]
    xsrt = -jnp.sort(-x, axis=-1)                             # descending
    rho = jnp.arange(1, d + 1, dtype=x.dtype)
    mean = jnp.cumsum(xsrt, axis=-1) / rho
    mean_sq = jnp.cumsum(xsrt ** 2, axis=-1) / rho
    ss = rho * (mean_sq - mean ** 2)
    delta = (1.0 - ss) / rho
    tau = mean - jnp.sqrt(jnp.maximum(delta, 0.0))
    support = jnp.sum(tau <= xsrt, axis=-1, keepdims=True)
    tau_star = jnp.take_along_axis(tau, support - 1, axis=-1)
    return jnp.maximum(x - tau_star, 0.0) ** 2


def _reference(priors, feat, w, gamma, beta, vbs):
    x = feat @ w.T
    nch = x.shape[0] // vbs
    xc = x.reshape(nch, vbs, -1)
    mean = xc.mean(axis=1, keepdims=True)
    var = ((xc - mean) ** 2).mean(axis=1, keepdims=True)      # biased variance
    xc = (xc - mean) / jnp.sqrt(var + BN_EPS) * gamma + beta
    x = xc.reshape(x.shape) * priors
    return _entmax15_ref(x)


if __name__ == "__main__":
    # Small shapes consistent with the module: tabular features, not images.
    B = 64          # total batch (2 ghost-batch chunks of 32)
    INPUT_DIM = 16  # Linear input features
    OUTPUT_DIM = 8  # Linear output features == prior/mask dimension
    VBS = 32        # virtual_batch_size from the notebook

    key = jax.random.PRNGKey(0)
    k_feat, k_prior, k_w = jax.random.split(key, 3)

    processed_feat = jax.random.normal(k_feat, (B, INPUT_DIM), dtype=jnp.float32)
    priors = jax.random.uniform(k_prior, (B, OUTPUT_DIM), dtype=jnp.float32,
                                minval=0.5, maxval=1.5)

    # Deterministic "xavier_normal_ with gain" init for fc.weight (F_out, F_in).
    gain = np.sqrt((INPUT_DIM + OUTPUT_DIM) / np.sqrt(4.0 * INPUT_DIM))
    std = gain * np.sqrt(2.0 / (INPUT_DIM + OUTPUT_DIM))
    fc_weight = std * jax.random.normal(k_w, (OUTPUT_DIM, INPUT_DIM),
                                        dtype=jnp.float32)

    # BatchNorm1d default affine params.
    bn_gamma = jnp.ones((OUTPUT_DIM,), jnp.float32)
    bn_beta = jnp.zeros((OUTPUT_DIM,), jnp.float32)

    out = attentive_transformer(priors, processed_feat, fc_weight,
                                bn_gamma, bn_beta, virtual_batch_size=VBS)
    out = jax.block_until_ready(out)
    out_np = np.asarray(out)

    ref = np.asarray(_reference(priors, processed_feat, fc_weight,
                                bn_gamma, bn_beta, VBS))

    assert out_np.shape == (B, OUTPUT_DIM)
    assert np.all(np.isfinite(out_np))
    assert np.allclose(out_np.sum(axis=-1), 1.0, atol=1e-3)
    assert np.allclose(out_np, ref, atol=2e-3), float(np.abs(out_np - ref).max())

    print("KERNEL_OK")
</pallas_src>

<mosaic_0001>
module attributes {stable_mosaic.version = 11 : i64} {
  func.func @_attentive_transformer_kernel(%arg0: i32, %arg1: memref<128x16xf32, #tpu.memory_space<vmem>>, %arg2: memref<128x8xf32, #tpu.memory_space<vmem>>, %arg3: memref<8x16xf32, #tpu.memory_space<vmem>>, %arg4: memref<128x4xf32, #tpu.memory_space<vmem>>, %arg5: memref<4x128xf32, #tpu.memory_space<vmem>>, %arg6: memref<8x1xf32, #tpu.memory_space<vmem>>, %arg7: memref<8x1xf32, #tpu.memory_space<vmem>>, %arg8: memref<8x128xf32, #tpu.memory_space<vmem>>) attributes {dimension_semantics = [#tpu.dimension_semantics<parallel>], iteration_bounds = array<i64: 1>, scalar_prefetch = 0 : i64, scratch_operands = 0 : i64, tpu.core_type = #tpu.core_type<tc>, window_params = [{transform_indices = @transform_0, window_bounds = array<i64: 128, 16>}, {transform_indices = @transform_1, window_bounds = array<i64: 128, 8>}, {pipeline_mode = #tpu.pipeline_mode<synchronous>, transform_indices = @transform_2, window_bounds = array<i64: 8, 16>}, {pipeline_mode = #tpu.pipeline_mode<synchronous>, transform_indices = @transform_3, window_bounds = array<i64: 128, 4>}, {pipeline_mode = #tpu.pipeline_mode<synchronous>, transform_indices = @transform_4, window_bounds = array<i64: 4, 128>}, {pipeline_mode = #tpu.pipeline_mode<synchronous>, transform_indices = @transform_5, window_bounds = array<i64: 8, 1>}, {pipeline_mode = #tpu.pipeline_mode<synchronous>, transform_indices = @transform_6, window_bounds = array<i64: 8, 1>}, {transform_indices = @transform_7, window_bounds = array<i64: 8, 128>}]} {
    %c0 = arith.constant 0 : index
    %c0_0 = arith.constant 0 : index
    %0 = vector.load %arg3[%c0, %c0_0] : memref<8x16xf32, #tpu.memory_space<vmem>>, vector<8x16xf32>
    %c0_1 = arith.constant 0 : index
    %c0_2 = arith.constant 0 : index
    %1 = vector.load %arg1[%c0_1, %c0_2] : memref<128x16xf32, #tpu.memory_space<vmem>>, vector<128x16xf32>
    %cst = arith.constant dense<0.000000e+00> : vector<8x128xf32>
    %2 = tpu.matmul %0, %1, %cst {dimension_numbers = #tpu.dot_dimension_numbers<[1], [1], [0], [0], [0, 0, 1, 0], [], []>} : vector<8x16xf32>, vector<128x16xf32>, vector<8x128xf32> -> vector<8x128xf32>
    %3 = tpu.iota {dimensions = array<i32: 0>} : vector<8x8xi32>
    %4 = tpu.iota {dimensions = array<i32: 1>} : vector<8x8xi32>
    %5 = arith.cmpi eq, %3, %4 : vector<8x8xi32>
    %6 = arith.extui %5 : vector<8x8xi1> to vector<8x8xi32>
    %7 = arith.sitofp %6 : vector<8x8xi32> to vector<8x8xf32>
    %c0_3 = arith.constant 0 : index
    %c0_4 = arith.constant 0 : index
    %8 = vector.load %arg2[%c0_3, %c0_4] : memref<128x8xf32, #tpu.memory_space<vmem>>, vector<128x8xf32>
    %cst_5 = arith.constant dense<0.000000e+00> : vector<8x128xf32>
    %9 = tpu.matmul %7, %8, %cst_5 {dimension_numbers = #tpu.dot_dimension_numbers<[1], [1], [0], [0], [0, 0, 1, 0], [], []>} : vector<8x8xf32>, vector<128x8xf32>, vector<8x128xf32> -> vector<8x128xf32>
    %10 = arith.mulf %2, %2 : vector<8x128xf32>
    %11 = tpu.concatenate %2, %10 in 0 : vector<8x128xf32>, vector<8x128xf32> -> vector<16x128xf32>
    %c0_6 = arith.constant 0 : index
    %c0_7 = arith.constant 0 : index
    %12 = vector.load %arg4[%c0_6, %c0_7] : memref<128x4xf32, #tpu.memory_space<vmem>>, vector<128x4xf32>
    %cst_8 = arith.constant dense<0.000000e+00> : vector<16x4xf32>
    %13 = tpu.matmul %11, %12, %cst_8 {dimension_numbers = #tpu.dot_dimension_numbers<[1], [0], [0], [1], [0, 0, 1, 1], [], []>} : vector<16x128xf32>, vector<128x4xf32>, vector<16x4xf32> -> vector<16x4xf32>
    %c0_9 = arith.constant 0 : index
    %c0_10 = arith.constant 0 : index
    %14 = vector.load %arg5[%c0_9, %c0_10] : memref<4x128xf32, #tpu.memory_space<vmem>>, vector<4x128xf32>
    %cst_11 = arith.constant dense<0.000000e+00> : vector<16x128xf32>
    %15 = tpu.matmul %13, %14, %cst_11 {dimension_numbers = #tpu.dot_dimension_numbers<[1], [0], [0], [1], [0, 0, 1, 1], [], []>} : vector<16x4xf32>, vector<4x128xf32>, vector<16x128xf32> -> vector<16x128xf32>
    %16 = vector.extract_strided_slice %15 {offsets = [0, 0], sizes = [8, 128], strides = [1, 1]} : vector<16x128xf32> to vector<8x128xf32>
    %17 = vector.extract_strided_slice %15 {offsets = [8, 0], sizes = [8, 128], strides = [1, 1]} : vector<16x128xf32> to vector<8x128xf32>
    %18 = arith.mulf %16, %16 : vector<8x128xf32>
    %19 = arith.subf %17, %18 : vector<8x128xf32>
    %cst_12 = arith.constant 0.000000e+00 : f32
    %20 = vector.broadcast %cst_12 : f32 to vector<8x128xf32>
    %21 = arith.maximumf %19, %20 : vector<8x128xf32>
    %cst_13 = arith.constant 9.99999974E-6 : f32
    %22 = vector.broadcast %cst_13 : f32 to vector<8x128xf32>
    %23 = arith.addf %21, %22 : vector<8x128xf32>
    %24 = math.rsqrt %23 : vector<8x128xf32>
    %c0_14 = arith.constant 0 : index
    %c0_15 = arith.constant 0 : index
    %25 = vector.load %arg6[%c0_14, %c0_15] : memref<8x1xf32, #tpu.memory_space<vmem>>, vector<8x1xf32>
    %26 = vector.broadcast %25 : vector<8x1xf32> to vector<8x128xf32>
    %27 = arith.mulf %24, %26 : vector<8x128xf32>
    %28 = arith.subf %2, %16 : vector<8x128xf32>
    %29 = arith.mulf %28, %27 : vector<8x128xf32>
    %c0_16 = arith.constant 0 : index
    %c0_17 = arith.constant 0 : index
    %30 = vector.load %arg7[%c0_16, %c0_17] : memref<8x1xf32, #tpu.memory_space<vmem>>, vector<8x1xf32>
    %31 = vector.broadcast %30 : vector<8x1xf32> to vector<8x128xf32>
    %32 = arith.addf %29, %31 : vector<8x128xf32>
    %33 = arith.mulf %32, %9 : vector<8x128xf32>
    %cst_18 = arith.constant dense<0xFF800000> : vector<128xf32>
    %34 = vector.multi_reduction <maximumf>, %33, %cst_18 [0] : vector<8x128xf32> to vector<128xf32>
    %35 = vector.shape_cast %34 : vector<128xf32> to vector<1x128xf32>
    %36 = vector.broadcast %35 : vector<1x128xf32> to vector<8x128xf32>
    %37 = arith.subf %33, %36 : vector<8x128xf32>
    %cst_19 = arith.constant 5.000000e-01 : f32
    %38 = vector.broadcast %cst_19 : f32 to vector<8x128xf32>
    %39 = arith.mulf %37, %38 : vector<8x128xf32>
    %cst_20 = arith.constant -1.000000e+00 : f32
    %40 = vector.broadcast %cst_20 : f32 to vector<1x128xf32>
    %c0_i32 = arith.constant 0 : i32
    %41 = vector.broadcast %40 : vector<1x128xf32> to vector<8x128xf32>
    %42 = arith.subf %39, %41 : vector<8x128xf32>
    %cst_21 = arith.constant 0.000000e+00 : f32
    %43 = vector.broadcast %cst_21 : f32 to vector<8x128xf32>
    %44 = arith.maximumf %42, %43 : vector<8x128xf32>
    %45 = arith.mulf %44, %44 : vector<8x128xf32>
    %cst_22 = arith.constant dense<0.000000e+00> : vector<128xf32>
    %46 = vector.multi_reduction <add>, %45, %cst_22 [0] : vector<8x128xf32> to vector<128xf32>
    %47 = vector.shape_cast %46 : vector<128xf32> to vector<1x128xf32>
    %cst_23 = arith.constant dense<0.000000e+00> : vector<128xf32>
    %48 = vector.multi_reduction <add>, %44, %cst_23 [0] : vector<8x128xf32> to vector<128xf32>
    %49 = vector.shape_cast %48 : vector<128xf32> to vector<1x128xf32>
    %cst_24 = arith.constant 1.000000e+00 : f32
    %50 = vector.broadcast %cst_24 : f32 to vector<1x128xf32>
    %51 = arith.subf %47, %50 : vector<1x128xf32>
    %cst_25 = arith.constant 0.000000e+00 : f32
    %52 = vector.broadcast %cst_25 : f32 to vector<1x128xf32>
    %53 = arith.maximumf %51, %52 : vector<1x128xf32>
    %54 = arith.addf %49, %49 : vector<1x128xf32>
    %55 = tpu.reciprocal %54 {approx = true} : vector<1x128xf32> -> vector<1x128xf32>
    %56 = arith.mulf %53, %55 : vector<1x128xf32>
    %57 = arith.addf %40, %56 : vector<1x128xf32>
    %c1_i32 = arith.constant 1 : i32
    %58 = vector.broadcast %57 : vector<1x128xf32> to vector<8x128xf32>
    %59 = arith.subf %39, %58 : vector<8x128xf32>
    %cst_26 = arith.constant 0.000000e+00 : f32
    %60 = vector.broadcast %cst_26 : f32 to vector<8x128xf32>
    %61 = arith.maximumf %59, %60 : vector<8x128xf32>
    %62 = arith.mulf %61, %61 : vector<8x128xf32>
    %cst_27 = arith.constant dense<0.000000e+00> : vector<128xf32>
    %63 = vector.multi_reduction <add>, %62, %cst_27 [0] : vector<8x128xf32> to vector<128xf32>
    %64 = vector.shape_cast %63 : vector<128xf32> to vector<1x128xf32>
    %cst_28 = arith.constant dense<0.000000e+00> : vector<128xf32>
    %65 = vector.multi_reduction <add>, %61, %cst_28 [0] : vector<8x128xf32> to vector<128xf32>
    %66 = vector.shape_cast %65 : vector<128xf32> to vector<1x128xf32>
    %cst_29 = arith.constant 1.000000e+00 : f32
    %67 = vector.broadcast %cst_29 : f32 to vector<1x128xf32>
    %68 = arith.subf %64, %67 : vector<1x128xf32>
    %cst_30 = arith.constant 0.000000e+00 : f32
    %69 = vector.broadcast %cst_30 : f32 to vector<1x128xf32>
    %70 = arith.maximumf %68, %69 : vector<1x128xf32>
    %71 = arith.addf %66, %66 : vector<1x128xf32>
    %72 = tpu.reciprocal %71 {approx = true} : vector<1x128xf32> -> vector<1x128xf32>
    %73 = arith.mulf %70, %72 : vector<1x128xf32>
    %74 = arith.addf %57, %73 : vector<1x128xf32>
    %c2_i32 = arith.constant 2 : i32
    %75 = vector.broadcast %74 : vector<1x128xf32> to vector<8x128xf32>
    %76 = arith.subf %39, %75 : vector<8x128xf32>
    %cst_31 = arith.constant 0.000000e+00 : f32
    %77 = vector.broadcast %cst_31 : f32 to vector<8x128xf32>
    %78 = arith.maximumf %76, %77 : vector<8x128xf32>
    %79 = arith.mulf %78, %78 : vector<8x128xf32>
    %cst_32 = arith.constant dense<0.000000e+00> : vector<128xf32>
    %80 = vector.multi_reduction <add>, %79, %cst_32 [0] : vector<8x128xf32> to vector<128xf32>
    %81 = vector.shape_cast %80 : vector<128xf32> to vector<1x128xf32>
    %cst_33 = arith.constant dense<0.000000e+00> : vector<128xf32>
    %82 = vector.multi_reduction <add>, %78, %cst_33 [0] : vector<8x128xf32> to vector<128xf32>
    %83 = vector.shape_cast %82 : vector<128xf32> to vector<1x128xf32>
    %cst_34 = arith.constant 1.000000e+00 : f32
    %84 = vector.broadcast %cst_34 : f32 to vector<1x128xf32>
    %85 = arith.subf %81, %84 : vector<1x128xf32>
    %cst_35 = arith.constant 0.000000e+00 : f32
    %86 = vector.broadcast %cst_35 : f32 to vector<1x128xf32>
    %87 = arith.maximumf %85, %86 : vector<1x128xf32>
    %88 = arith.addf %83, %83 : vector<1x128xf32>
    %89 = tpu.reciprocal %88 {approx = true} : vector<1x128xf32> -> vector<1x128xf32>
    %90 = arith.mulf %87, %89 : vector<1x128xf32>
    %91 = arith.addf %74, %90 : vector<1x128xf32>
    %c3_i32 = arith.constant 3 : i32
    %92 = vector.broadcast %91 : vector<1x128xf32> to vector<8x128xf32>
    %93 = arith.subf %39, %92 : vector<8x128xf32>
    %cst_36 = arith.constant 0.000000e+00 : f32
    %94 = vector.broadcast %cst_36 : f32 to vector<8x128xf32>
    %95 = arith.maximumf %93, %94 : vector<8x128xf32>
    %96 = arith.mulf %95, %95 : vector<8x128xf32>
    %cst_37 = arith.constant dense<0.000000e+00> : vector<128xf32>
    %97 = vector.multi_reduction <add>, %96, %cst_37 [0] : vector<8x128xf32> to vector<128xf32>
    %98 = vector.shape_cast %97 : vector<128xf32> to vector<1x128xf32>
    %cst_38 = arith.constant dense<0.000000e+00> : vector<128xf32>
    %99 = vector.multi_reduction <add>, %95, %cst_38 [0] : vector<8x128xf32> to vector<128xf32>
    %100 = vector.shape_cast %99 : vector<128xf32> to vector<1x128xf32>
    %cst_39 = arith.constant 1.000000e+00 : f32
    %101 = vector.broadcast %cst_39 : f32 to vector<1x128xf32>
    %102 = arith.subf %98, %101 : vector<1x128xf32>
    %cst_40 = arith.constant 0.000000e+00 : f32
    %103 = vector.broadcast %cst_40 : f32 to vector<1x128xf32>
    %104 = arith.maximumf %102, %103 : vector<1x128xf32>
    %105 = arith.addf %100, %100 : vector<1x128xf32>
    %106 = tpu.reciprocal %105 {approx = true} : vector<1x128xf32> -> vector<1x128xf32>
    %107 = arith.mulf %104, %106 : vector<1x128xf32>
    %108 = arith.addf %91, %107 : vector<1x128xf32>
    %c4_i32 = arith.constant 4 : i32
    %109 = vector.broadcast %108 : vector<1x128xf32> to vector<8x128xf32>
    %110 = arith.subf %39, %109 : vector<8x128xf32>
    %cst_41 = arith.constant 0.000000e+00 : f32
    %111 = vector.broadcast %cst_41 : f32 to vector<8x128xf32>
    %112 = arith.maximumf %110, %111 : vector<8x128xf32>
    %113 = arith.mulf %112, %112 : vector<8x128xf32>
    %cst_42 = arith.constant dense<0.000000e+00> : vector<128xf32>
    %114 = vector.multi_reduction <add>, %113, %cst_42 [0] : vector<8x128xf32> to vector<128xf32>
    %115 = vector.shape_cast %114 : vector<128xf32> to vector<1x128xf32>
    %cst_43 = arith.constant dense<0.000000e+00> : vector<128xf32>
    %116 = vector.multi_reduction <add>, %112, %cst_43 [0] : vector<8x128xf32> to vector<128xf32>
    %117 = vector.shape_cast %116 : vector<128xf32> to vector<1x128xf32>
    %cst_44 = arith.constant 1.000000e+00 : f32
    %118 = vector.broadcast %cst_44 : f32 to vector<1x128xf32>
    %119 = arith.subf %115, %118 : vector<1x128xf32>
    %cst_45 = arith.constant 0.000000e+00 : f32
    %120 = vector.broadcast %cst_45 : f32 to vector<1x128xf32>
    %121 = arith.maximumf %119, %120 : vector<1x128xf32>
    %122 = arith.addf %117, %117 : vector<1x128xf32>
    %123 = tpu.reciprocal %122 {approx = true} : vector<1x128xf32> -> vector<1x128xf32>
    %124 = arith.mulf %121, %123 : vector<1x128xf32>
    %125 = arith.addf %108, %124 : vector<1x128xf32>
    %c5_i32 = arith.constant 5 : i32
    %126 = vector.broadcast %125 : vector<1x128xf32> to vector<8x128xf32>
    %127 = arith.subf %39, %126 : vector<8x128xf32>
    %cst_46 = arith.constant 0.000000e+00 : f32
    %128 = vector.broadcast %cst_46 : f32 to vector<8x128xf32>
    %129 = arith.maximumf %127, %128 : vector<8x128xf32>
    %130 = arith.mulf %129, %129 : vector<8x128xf32>
    %cst_47 = arith.constant dense<0.000000e+00> : vector<128xf32>
    %131 = vector.multi_reduction <add>, %130, %cst_47 [0] : vector<8x128xf32> to vector<128xf32>
    %132 = vector.shape_cast %131 : vector<128xf32> to vector<1x128xf32>
    %cst_48 = arith.constant dense<0.000000e+00> : vector<128xf32>
    %133 = vector.multi_reduction <add>, %129, %cst_48 [0] : vector<8x128xf32> to vector<128xf32>
    %134 = vector.shape_cast %133 : vector<128xf32> to vector<1x128xf32>
    %cst_49 = arith.constant 1.000000e+00 : f32
    %135 = vector.broadcast %cst_49 : f32 to vector<1x128xf32>
    %136 = arith.subf %132, %135 : vector<1x128xf32>
    %cst_50 = arith.constant 0.000000e+00 : f32
    %137 = vector.broadcast %cst_50 : f32 to vector<1x128xf32>
    %138 = arith.maximumf %136, %137 : vector<1x128xf32>
    %139 = arith.addf %134, %134 : vector<1x128xf32>
    %140 = tpu.reciprocal %139 {approx = true} : vector<1x128xf32> -> vector<1x128xf32>
    %141 = arith.mulf %138, %140 : vector<1x128xf32>
    %142 = arith.addf %125, %141 : vector<1x128xf32>
    %c6_i32 = arith.constant 6 : i32
    %143 = vector.broadcast %142 : vector<1x128xf32> to vector<8x128xf32>
    %144 = arith.subf %39, %143 : vector<8x128xf32>
    %cst_51 = arith.constant 0.000000e+00 : f32
    %145 = vector.broadcast %cst_51 : f32 to vector<8x128xf32>
    %146 = arith.maximumf %144, %145 : vector<8x128xf32>
    %147 = arith.mulf %146, %146 : vector<8x128xf32>
    %cst_52 = arith.constant dense<0.000000e+00> : vector<128xf32>
    %148 = vector.multi_reduction <add>, %147, %cst_52 [0] : vector<8x128xf32> to vector<128xf32>
    %149 = vector.shape_cast %148 : vector<128xf32> to vector<1x128xf32>
    %cst_53 = arith.constant dense<0.000000e+00> : vector<128xf32>
    %150 = vector.multi_reduction <add>, %146, %cst_53 [0] : vector<8x128xf32> to vector<128xf32>
    %151 = vector.shape_cast %150 : vector<128xf32> to vector<1x128xf32>
    %cst_54 = arith.constant 1.000000e+00 : f32
    %152 = vector.broadcast %cst_54 : f32 to vector<1x128xf32>
    %153 = arith.subf %149, %152 : vector<1x128xf32>
    %cst_55 = arith.constant 0.000000e+00 : f32
    %154 = vector.broadcast %cst_55 : f32 to vector<1x128xf32>
    %155 = arith.maximumf %153, %154 : vector<1x128xf32>
    %156 = arith.addf %151, %151 : vector<1x128xf32>
    %157 = tpu.reciprocal %156 {approx = true} : vector<1x128xf32> -> vector<1x128xf32>
    %158 = arith.mulf %155, %157 : vector<1x128xf32>
    %159 = arith.addf %142, %158 : vector<1x128xf32>
    %160 = vector.broadcast %159 : vector<1x128xf32> to vector<8x128xf32>
    %161 = arith.subf %39, %160 : vector<8x128xf32>
    %cst_56 = arith.constant 0.000000e+00 : f32
    %162 = vector.broadcast %cst_56 : f32 to vector<8x128xf32>
    %163 = arith.maximumf %161, %162 : vector<8x128xf32>
    %164 = arith.mulf %163, %163 : vector<8x128xf32>
    %cst_57 = arith.constant dense<0.000000e+00> : vector<128xf32>
    %165 = vector.multi_reduction <add>, %164, %cst_57 [0] : vector<8x128xf32> to vector<128xf32>
    %166 = vector.shape_cast %165 : vector<128xf32> to vector<1x128xf32>
    %cst_58 = arith.constant dense<0.000000e+00> : vector<128xf32>
    %167 = vector.multi_reduction <add>, %163, %cst_58 [0] : vector<8x128xf32> to vector<128xf32>
    %168 = vector.shape_cast %167 : vector<128xf32> to vector<1x128xf32>
    %cst_59 = arith.constant 1.000000e+00 : f32
    %169 = vector.broadcast %cst_59 : f32 to vector<1x128xf32>
    %170 = arith.subf %166, %169 : vector<1x128xf32>
    %171 = arith.addf %168, %168 : vector<1x128xf32>
    %172 = arith.divf %170, %171 : vector<1x128xf32>
    %173 = arith.addf %159, %172 : vector<1x128xf32>
    %174 = vector.broadcast %173 : vector<1x128xf32> to vector<8x128xf32>
    %175 = arith.subf %39, %174 : vector<8x128xf32>
    %cst_60 = arith.constant 0.000000e+00 : f32
    %176 = vector.broadcast %cst_60 : f32 to vector<8x128xf32>
    %177 = arith.maximumf %175, %176 : vector<8x128xf32>
    %178 = arith.mulf %177, %177 : vector<8x128xf32>
    %cst_61 = arith.constant dense<0.000000e+00> : vector<128xf32>
    %179 = vector.multi_reduction <add>, %178, %cst_61 [0] : vector<8x128xf32> to vector<128xf32>
    %180 = vector.shape_cast %179 : vector<128xf32> to vector<1x128xf32>
    %181 = vector.broadcast %180 : vector<1x128xf32> to vector<8x128xf32>
    %182 = arith.divf %178, %181 : vector<8x128xf32>
    %c0_62 = arith.constant 0 : index
    %c0_63 = arith.constant 0 : index
    %183 = vector.load %arg8[%c0_62, %c0_63] : memref<8x128xf32, #tpu.memory_space<vmem>>, vector<8x128xf32>
    tpu.vector_store %arg8[%c0_62, %c0_63], %182 {strides = array<i32>} : memref<8x128xf32, #tpu.memory_space<vmem>>, vector<8x128xf32>,
    return
  }
  func.func @transform_0(%arg0: i32) -> (i32, i32) {
    %c0_i32 = arith.constant 0 : i32
    %c0_i32_0 = arith.constant 0 : i32
    return %arg0, %c0_i32 : i32, i32
  }
  func.func @transform_1(%arg0: i32) -> (i32, i32) {
    %c0_i32 = arith.constant 0 : i32
    %c0_i32_0 = arith.constant 0 : i32
    return %arg0, %c0_i32 : i32, i32
  }
  func.func @transform_2(%arg0: i32) -> (i32, i32) {
    %c0_i32 = arith.constant 0 : i32
    %c0_i32_0 = arith.constant 0 : i32
    %c0_i32_1 = arith.constant 0 : i32
    return %c0_i32, %c0_i32_0 : i32, i32
  }
  func.func @transform_3(%arg0: i32) -> (i32, i32) {
    %c0_i32 = arith.constant 0 : i32
    %c0_i32_0 = arith.constant 0 : i32
    %c0_i32_1 = arith.constant 0 : i32
    return %c0_i32, %c0_i32_0 : i32, i32
  }
  func.func @transform_4(%arg0: i32) -> (i32, i32) {
    %c0_i32 = arith.constant 0 : i32
    %c0_i32_0 = arith.constant 0 : i32
    %c0_i32_1 = arith.constant 0 : i32
    return %c0_i32, %c0_i32_0 : i32, i32
  }
  func.func @transform_5(%arg0: i32) -> (i32, i32) {
    %c0_i32 = arith.constant 0 : i32
    %c0_i32_0 = arith.constant 0 : i32
    %c0_i32_1 = arith.constant 0 : i32
    return %c0_i32, %c0_i32_0 : i32, i32
  }
  func.func @transform_6(%arg0: i32) -> (i32, i32) {
    %c0_i32 = arith.constant 0 : i32
    %c0_i32_0 = arith.constant 0 : i32
    %c0_i32_1 = arith.constant 0 : i32
    return %c0_i32, %c0_i32_0 : i32, i32
  }
  func.func @transform_7(%arg0: i32) -> (i32, i32) {
    %c0_i32 = arith.constant 0 : i32
    %c0_i32_0 = arith.constant 0 : i32
    return %c0_i32, %arg0 : i32, i32
  }
}

</mosaic_0001>

<llo_original>
// kernel: tpu_custom_call.1
$region0: #{tpu_custom_call.1}
  #allocation0 [shape = 'u32[]', space=smem, size = 0x4, offset = 0x4, fixed_abs, tag = 'smem constant byte address 0x4 - core index']
  #allocation1 [shape = 'u32[72,128]{1,0:T(1,128)}', space=vmem, size = 0x9000, scoped, tag = 'internal scratch']
  %s0 = inlined_call_operand.vmem [shape: f32[128,16], index: 0, kind: input, shape index: {}]
  %s1 = inlined_call_operand.vmem [shape: f32[128,8], index: 1, kind: input, shape index: {}]
  %s2 = inlined_call_operand.vmem [shape: f32[8,16], index: 2, kind: input, shape index: {}]
  %s3 = inlined_call_operand.vmem [shape: f32[128,4], index: 3, kind: input, shape index: {}]
  %s4 = inlined_call_operand.vmem [shape: f32[4,128], index: 4, kind: input, shape index: {}]
  %s5 = inlined_call_operand.vmem [shape: f32[8,1], index: 5, kind: input, shape index: {}]
  %s6 = inlined_call_operand.vmem [shape: f32[8,1], index: 6, kind: input, shape index: {}]
  %s7 = inlined_call_operand.hbm [shape: f32[8,128], index: 7, kind: output, shape index: {}]
  %s8 = sld [smem:[#allocation0]]
  $region38: #{tpu_custom_call.1} parent=0
    _
  %s10 = ssub.s32 1, %s8
  %s11 = scalar_select 0, %s10, %s8
  $region1: #{tpu_custom_call.1} parent=0
    #allocation2 [shape = 'u8[4096]{0}', space=vmem, size = 0x1000, scoped, tag = 'output window, operand 0, single buffered']
    #allocation3 [shape = 's32[1]{0}', space=sflag, size = 0x4, scoped, tag = 'scoped memory for tpu_custom_call.1']
    %12 = vsyncpa [#allocation3], 0
    // Predicated region
    $region2: #{tpu_custom_call.1} parent=1 // pred_check
      _
    $region3: #{tpu_custom_call.1} parent=1 // pred_check_branch
      %14 = sbr.rel (0) target = $region5
    $region4: #{tpu_custom_call.1} parent=1 // pred_region
      _
    $region5: #{tpu_custom_call.1} parent=1 // pred_fallthru
      _
    // Predicated region
    $region6: #{tpu_custom_call.1} parent=1 // pred_check
      _
    $region7: #{tpu_custom_call.1} parent=1 // pred_check_branch
      %16 = sbr.rel (0) target = $region9
    $region8: #{tpu_custom_call.1} parent=1 // pred_region
      _
    $region9: #{tpu_custom_call.1} parent=1 // pred_fallthru
      _
    // Predicated region
    $region10: #{tpu_custom_call.1} parent=1 // pred_check
      _
    $region11: #{tpu_custom_call.1} parent=1 // pred_check_branch
      %18 = sbr.rel (0) target = $region13
    $region12: #{tpu_custom_call.1} parent=1 // pred_region
      _
    $region13: #{tpu_custom_call.1} parent=1 // pred_fallthru
      _
    // Predicated region
    $region14: #{tpu_custom_call.1} parent=1 // pred_check
      _
    $region15: #{tpu_custom_call.1} parent=1 // pred_check_branch
      %20 = sbr.rel (0) target = $region17
    $region16: #{tpu_custom_call.1} parent=1 // pred_region
      _
    $region17: #{tpu_custom_call.1} parent=1 // pred_fallthru
      _
    // Predicated region
    $region18: #{tpu_custom_call.1} parent=1 // pred_check
      _
    $region19: #{tpu_custom_call.1} parent=1 // pred_check_branch
      %22 = sbr.rel (0) target = $region21
    $region20: #{tpu_custom_call.1} parent=1 // pred_region
      _
    $region21: #{tpu_custom_call.1} parent=1 // pred_fallthru
      _
    // Predicated region
    $region22: #{tpu_custom_call.1} parent=1 // pred_check
      _
    $region23: #{tpu_custom_call.1} parent=1 // pred_check_branch
      %24 = sbr.rel (0) target = $region25
    $region24: #{tpu_custom_call.1} parent=1 // pred_region
      _
    $region25: #{tpu_custom_call.1} parent=1 // pred_fallthru
      _
    // Predicated region
    $region26: #{tpu_custom_call.1} parent=1 // pred_check
      _
    $region27: #{tpu_custom_call.1} parent=1 // pred_check_branch
      %26 = sbr.rel (0) target = $region29
    $region28: #{tpu_custom_call.1} parent=1 // pred_region
      _
    $region29: #{tpu_custom_call.1} parent=1 // pred_fallthru
      _
    %v27 = vld [vmem:[%s2] sm:$0xff]
    %v28 = vld [vmem:[%s0] sm:$0xff]
    %v29 = vld [vmem:[%s0 + $0x8] sm:$0xff]
    %v30 = vld [vmem:[%s0 + $0x10] sm:$0xff]
    %v31 = vld [vmem:[%s0 + $0x18] sm:$0xff]
    %v32 = vld [vmem:[%s0 + $0x20] sm:$0xff]
    %v33 = vld [vmem:[%s0 + $0x28] sm:$0xff]
    %v34 = vld [vmem:[%s0 + $0x30] sm:$0xff]
    %v35 = vld [vmem:[%s0 + $0x38] sm:$0xff]
    %v36 = vld [vmem:[%s0 + $0x40] sm:$0xff]
    %v37 = vld [vmem:[%s0 + $0x48] sm:$0xff]
    %v38 = vld [vmem:[%s0 + $0x50] sm:$0xff]
    %v39 = vld [vmem:[%s0 + $0x58] sm:$0xff]
    %v40 = vld [vmem:[%s0 + $0x60] sm:$0xff]
    %v41 = vld [vmem:[%s0 + $0x68] sm:$0xff]
    %v42 = vld [vmem:[%s0 + $0x70] sm:$0xff]
    %v43 = vld [vmem:[%s0 + $0x78] sm:$0xff]
    %vm44 = vcmask 130048
    %v46 = vsel %vm44, %v27, 0
    %v49 = vsel %vm44, %v28, 0
    %v52 = vsel %vm44, %v29, 0
    %v55 = vsel %vm44, %v30, 0
    %v58 = vsel %vm44, %v31, 0
    %v61 = vsel %vm44, %v32, 0
    %v64 = vsel %vm44, %v33, 0
    %v67 = vsel %vm44, %v34, 0
    %v70 = vsel %vm44, %v35, 0
    %v73 = vsel %vm44, %v36, 0
    %v76 = vsel %vm44, %v37, 0
    %v79 = vsel %vm44, %v38, 0
    %v82 = vsel %vm44, %v39, 0
    %v85 = vsel %vm44, %v40, 0
    %v88 = vsel %vm44, %v41, 0
    %v91 = vsel %vm44, %v42, 0
    %v94 = vsel %vm44, %v43, 0
    %96 = vmatpush.xpose.msra.mxu0 %v94
    %97 = vmatpush.xpose.msra.mxu0 %v91
    %98 = vmatpush.xpose.msra.mxu0 %v88
    %99 = vmatpush.xpose.msra.mxu0 %v85
    %100 = vmatpush.xpose.msra.mxu0 %v82
    %101 = vmatpush.xpose.msra.mxu0 %v79
    %102 = vmatpush.xpose.msra.mxu0 %v76
    %103 = vmatpush.xpose.msra.mxu0 %v73
    %104 = vmatpush.xpose.msra.mxu0 %v70
    %105 = vmatpush.xpose.msra.mxu0 %v67
    %106 = vmatpush.xpose.msra.mxu0 %v64
    %107 = vmatpush.xpose.msra.mxu0 %v61
    %108 = vmatpush.xpose.msra.mxu0 %v58
    %109 = vmatpush.xpose.msra.mxu0 %v55
    %110 = vmatpush.xpose.msra.mxu0 %v52
    %111 = vmatpush.xpose.msra.mxu0 %v49
    %112 = vmatmul.f32.gmra.mxu0 %v46
    %v113 = vpop.f32.mrf.mxu0
    %v114 = vadd.f32 0.0, %v113
    %115 = vdwg.mxu0
    %v116 = vlaneseq
    %v117 = vshrl.u32 %v116, 7
    %v118 = vlaneseq
    %v119 = vand.u32 %v118, 127
    %vm120 = vcmp.eq.s32.totalorder %v117, %v119
    %v121 = vsel %vm120, 1, 0
    %v122 = vcvt.s32.f32 %v121
    %v123 = vld [vmem:[%s1] sm:$0xff]
    %v124 = vld [vmem:[%s1 + $0x8] sm:$0xff]
    %v125 = vld [vmem:[%s1 + $0x10] sm:$0xff]
    %v126 = vld [vmem:[%s1 + $0x18] sm:$0xff]
    %v127 = vld [vmem:[%s1 + $0x20] sm:$0xff]
    %v128 = vld [vmem:[%s1 + $0x28] sm:$0xff]
    %v129 = vld [vmem:[%s1 + $0x30] sm:$0xff]
    %v130 = vld [vmem:[%s1 + $0x38] sm:$0xff]
    %v131 = vld [vmem:[%s1 + $0x40] sm:$0xff]
    %v132 = vld [vmem:[%s1 + $0x48] sm:$0xff]
    %v133 = vld [vmem:[%s1 + $0x50] sm:$0xff]
    %v134 = vld [vmem:[%s1 + $0x58] sm:$0xff]
    %v135 = vld [vmem:[%s1 + $0x60] sm:$0xff]
    %v136 = vld [vmem:[%s1 + $0x68] sm:$0xff]
    %v137 = vld [vmem:[%s1 + $0x70] sm:$0xff]
    %v138 = vld [vmem:[%s1 + $0x78] sm:$0xff]
    %vm139 = vcmask 64512
    %v141 = vsel %vm139, %v122, 0
    %v144 = vsel %vm139, %v123, 0
    %v147 = vsel %vm139, %v124, 0
    %v150 = vsel %vm139, %v125, 0
    %v153 = vsel %vm139, %v126, 0
    %v156 = vsel %vm139, %v127, 0
    %v159 = vsel %vm139, %v128, 0
    %v162 = vsel %vm139, %v129, 0
    %v165 = vsel %vm139, %v130, 0
    %v168 = vsel %vm139, %v131, 0
    %v171 = vsel %vm139, %v132, 0
    %v174 = vsel %vm139, %v133, 0
    %v177 = vsel %vm139, %v134, 0
    %v180 = vsel %vm139, %v135, 0
    %v183 = vsel %vm139, %v136, 0
    %v186 = vsel %vm139, %v137, 0
    %v189 = vsel %vm139, %v138, 0
    %191 = vmatpush.xpose.msra.mxu0 %v189
    %192 = vmatpush.xpose.msra.mxu0 %v186
    %193 = vmatpush.xpose.msra.mxu0 %v183
    %194 = vmatpush.xpose.msra.mxu0 %v180
    %195 = vmatpush.xpose.msra.mxu0 %v177
    %196 = vmatpush.xpose.msra.mxu0 %v174
    %197 = vmatpush.xpose.msra.mxu0 %v171
    %198 = vmatpush.xpose.msra.mxu0 %v168
    %199 = vmatpush.xpose.msra.mxu0 %v165
    %200 = vmatpush.xpose.msra.mxu0 %v162
    %201 = vmatpush.xpose.msra.mxu0 %v159
    %202 = vmatpush.xpose.msra.mxu0 %v156
    %203 = vmatpush.xpose.msra.mxu0 %v153
    %204 = vmatpush.xpose.msra.mxu0 %v150
    %205 = vmatpush.xpose.msra.mxu0 %v147
    %206 = vmatpush.xpose.msra.mxu0 %v144
    %207 = vmatmul.f32.gmra.mxu0 %v141
    %v208 = vpop.f32.mrf.mxu0
    %v209 = vadd.f32 0.0, %v208
    %210 = vdwg.mxu0
    %v211 = vmul.f32 %v114, %v114
    %v212 = vld [vmem:[%s3] sm:$0xff]
    %v213 = vld [vmem:[%s3 + $0x8] sm:$0xff]
    %v214 = vld [vmem:[%s3 + $0x10] sm:$0xff]
    %v215 = vld [vmem:[%s3 + $0x18] sm:$0xff]
    %v216 = vld [vmem:[%s3 + $0x20] sm:$0xff]
    %v217 = vld [vmem:[%s3 + $0x28] sm:$0xff]
    %v218 = vld [vmem:[%s3 + $0x30] sm:$0xff]
    %v219 = vld [vmem:[%s3 + $0x38] sm:$0xff]
    %v220 = vld [vmem:[%s3 + $0x40] sm:$0xff]
    %v221 = vld [vmem:[%s3 + $0x48] sm:$0xff]
    %v222 = vld [vmem:[%s3 + $0x50] sm:$0xff]
    %v223 = vld [vmem:[%s3 + $0x58] sm:$0xff]
    %v224 = vld [vmem:[%s3 + $0x60] sm:$0xff]
    %v225 = vld [vmem:[%s3 + $0x68] sm:$0xff]
    %v226 = vld [vmem:[%s3 + $0x70] sm:$0xff]
    %v227 = vld [vmem:[%s3 + $0x78] sm:$0xff]
    %228 = vmatpush.msra.mxu0 %v227
    %229 = vmatpush.msra.mxu0 %v226
    %230 = vmatpush.msra.mxu0 %v225
    %231 = vmatpush.msra.mxu0 %v224
    %232 = vmatpush.msra.mxu0 %v223
    %233 = vmatpush.msra.mxu0 %v222
    %234 = vmatpush.msra.mxu0 %v221
    %235 = vmatpush.msra.mxu0 %v220
    %236 = vmatpush.msra.mxu0 %v219
    %237 = vmatpush.msra.mxu0 %v218
    %238 = vmatpush.msra.mxu0 %v217
    %239 = vmatpush.msra.mxu0 %v216
    %240 = vmatpush.msra.mxu0 %v215
    %241 = vmatpush.msra.mxu0 %v214
    %242 = vmatpush.msra.mxu0 %v213
    %243 = vmatpush.msra.mxu0 %v212
    %244 = vmatmul.f32.gmra.mxu0 %v114
    %v245 = vpop.f32.mrf.mxu0
    %v246 = vadd.f32 0.0, %v245
    %247 = vmatmul.f32.gmra.mxu0 %v211
    %v248 = vpop.f32.mrf.mxu0
    %v249 = vadd.f32 0.0, %v248
    %250 = vdwg.mxu0
    %v251 = vld [vmem:[%s4] sm:$0xf]
    %vm252 = vcmask 31744
    %v254 = vsel %vm252, %v246, 0
    %v257 = vsel %vm252, %v249, 0
    %vm259 = vcmask 1043456
    %v261 = vsel %vm259, %v251, 0
    %263 = vmatpush.msra.mxu0 0.0
    %264 = vmatpush.msra.mxu0 0.0
    %265 = vmatpush.msra.mxu0 0.0
    %266 = vmatpush.msra.mxu0 0.0
    %267 = vmatpush.msra.mxu0 0.0
    %268 = vmatpush.msra.mxu0 0.0
    %269 = vmatpush.msra.mxu0 0.0
    %270 = vmatpush.msra.mxu0 0.0
    %271 = vmatpush.msra.mxu0 0.0
    %272 = vmatpush.msra.mxu0 0.0
    %273 = vmatpush.msra.mxu0 0.0
    %274 = vmatpush.msra.mxu0 0.0
    %275 = vmatpush.msra.mxu0 0.0
    %276 = vmatpush.msra.mxu0 0.0
    %277 = vmatpush.msra.mxu0 0.0
    %278 = vmatpush.msra.mxu0 %v261
    %279 = vmatmul.f32.gmra.mxu0 %v254
    %v280 = vpop.f32.mrf.mxu0
    %v281 = vadd.f32 0.0, %v280
    %282 = vmatmul.f32.gmra.mxu0 %v257
    %v283 = vpop.f32.mrf.mxu0
    %v284 = vadd.f32 0.0, %v283
    %285 = vdwg.mxu0
    %v286 = vmul.f32 %v281, %v281
    %v287 = vsub.f32 %v284, %v286
    %v288 = vmax.f32 %v287, 0.0
    %v289 = vadd.f32 %v288, 1e-05
    %v290 = vrsqrt.pop %v289
    %v291 = vmul.f32 %v290, %v289
    %v292 = vmul.f32 %v291, %v290
    %v293 = vmul.f32 0.5, %v292
    %v294 = vsub.f32 1.5, %v293
    %v295 = vmul.f32 %v290, %v294
    %vm296 = vweird.f32 %v289
    %vm297 = vweird.f32 %v290
    %vm298 = vmor %vm296, %vm297
    %v299 = vsel %vm298, %v290, %v295
    %v300 = vld [vmem:[%s5] sm:$0xff]
    %302 = vset.pattern.permute.xlu0 0
    %303 = vperm.xlu0 %302, %v300
    %v304 = vpop.permute.xlu0 %303
    %v306 = vmul.f32 %v299, %v304
    %v307 = vsub.f32 %v114, %v281
    %v308 = vmul.f32 %v307, %v306
    %v309 = vld [vmem:[%s6] sm:$0xff]
    %311 = vset.pattern.permute.xlu0 0
    %312 = vperm.xlu0 %311, %v309
    %v313 = vpop.permute.xlu0 %312
    %v315 = vadd.f32 %v308, %v313
    %v316 = vmul.f32 %v315, %v209
    %v317 = vrot.slane %v316, 4
    %v318 = vmax.f32 %v316, %v317
    %v319 = vrot.slane %v318, 2
    %v320 = vmax.f32 %v318, %v319
    %v321 = vrot.slane %v320, 1
    %v322 = vmax.f32 %v320, %v321
    %v323 = vsub.f32 %v316, %v322
    %v324 = vmul.f32 %v323, 0.5
    %v325 = vsub.f32 %v324, -1.0
    %v326 = vmax.f32 %v325, 0.0
    %v327 = vmul.f32 %v326, %v326
    %v328 = vrot.slane %v327, 4
    %v329 = vadd.f32 %v327, %v328
    %v330 = vrot.slane %v329, 2
    %v331 = vadd.f32 %v329, %v330
    %v332 = vrot.slane %v331, 1
    %v333 = vadd.f32 %v331, %v332
    %v334 = vrot.slane %v326, 4
    %v335 = vadd.f32 %v326, %v334
    %v336 = vrot.slane %v335, 2
    %v337 = vadd.f32 %v335, %v336
    %v338 = vrot.slane %v337, 1
    %v339 = vadd.f32 %v337, %v338
    %v340 = vsub.f32 %v333, 1.0
    %v341 = vmax.f32 %v340, 0.0
    %v342 = vadd.f32 %v339, %v339
    %v343 = vrcp.pop %v342
    %v344 = vmul.f32 %v341, %v343
    %v345 = vadd.f32 %v344, -1.0
    %v346 = vsub.f32 %v324, %v345
    %v347 = vmax.f32 %v346, 0.0
    %v348 = vmul.f32 %v347, %v347
    %v349 = vrot.slane %v348, 4
    %v350 = vadd.f32 %v348, %v349
    %v351 = vrot.slane %v350, 2
    %v352 = vadd.f32 %v350, %v351
    %v353 = vrot.slane %v352, 1
    %v354 = vadd.f32 %v352, %v353
    %v355 = vrot.slane %v347, 4
    %v356 = vadd.f32 %v347, %v355
    %v357 = vrot.slane %v356, 2
    %v358 = vadd.f32 %v356, %v357
    %v359 = vrot.slane %v358, 1
    %v360 = vadd.f32 %v358, %v359
    %v361 = vsub.f32 %v354, 1.0
    %v362 = vmax.f32 %v361, 0.0
    %v363 = vadd.f32 %v360, %v360
    %v364 = vrcp.pop %v363
    %v365 = vmul.f32 %v362, %v364
    %v366 = vadd.f32 %v345, %v365
    %v367 = vsub.f32 %v324, %v366
    %v368 = vmax.f32 %v367, 0.0
    %v369 = vmul.f32 %v368, %v368
    %v370 = vrot.slane %v369, 4
    %v371 = vadd.f32 %v369, %v370
    %v372 = vrot.slane %v371, 2
    %v373 = vadd.f32 %v371, %v372
    %v374 = vrot.slane %v373, 1
    %v375 = vadd.f32 %v373, %v374
    %v376 = vrot.slane %v368, 4
    %v377 = vadd.f32 %v368, %v376
    %v378 = vrot.slane %v377, 2
    %v379 = vadd.f32 %v377, %v378
    %v380 = vrot.slane %v379, 1
    %v381 = vadd.f32 %v379, %v380
    %v382 = vsub.f32 %v375, 1.0
    %v383 = vmax.f32 %v382, 0.0
    %v384 = vadd.f32 %v381, %v381
    %v385 = vrcp.pop %v384
    %v386 = vmul.f32 %v383, %v385
    %v387 = vadd.f32 %v366, %v386
    %v388 = vsub.f32 %v324, %v387
    %v389 = vmax.f32 %v388, 0.0
    %v390 = vmul.f32 %v389, %v389
    %v391 = vrot.slane %v390, 4
    %v392 = vadd.f32 %v390, %v391
    %v393 = vrot.slane %v392, 2
    %v394 = vadd.f32 %v392, %v393
    %v395 = vrot.slane %v394, 1
    %v396 = vadd.f32 %v394, %v395
    %v397 = vrot.slane %v389, 4
    %v398 = vadd.f32 %v389, %v397
    %v399 = vrot.slane %v398, 2
    %v400 = vadd.f32 %v398, %v399
    %v401 = vrot.slane %v400, 1
    %v402 = vadd.f32 %v400, %v401
    %v403 = vsub.f32 %v396, 1.0
    %v404 = vmax.f32 %v403, 0.0
    %v405 = vadd.f32 %v402, %v402
    %v406 = vrcp.pop %v405
    %v407 = vmul.f32 %v404, %v406
    %v408 = vadd.f32 %v387, %v407
    %v409 = vsub.f32 %v324, %v408
    %v410 = vmax.f32 %v409, 0.0
    %v411 = vmul.f32 %v410, %v410
    %v412 = vrot.slane %v411, 4
    %v413 = vadd.f32 %v411, %v412
    %v414 = vrot.slane %v413, 2
    %v415 = vadd.f32 %v413, %v414
    %v416 = vrot.slane %v415, 1
    %v417 = vadd.f32 %v415, %v416
    %v418 = vrot.slane %v410, 4
    %v419 = vadd.f32 %v410, %v418
    %v420 = vrot.slane %v419, 2
    %v421 = vadd.f32 %v419, %v420
    %v422 = vrot.slane %v421, 1
    %v423 = vadd.f32 %v421, %v422
    %v424 = vsub.f32 %v417, 1.0
    %v425 = vmax.f32 %v424, 0.0
    %v426 = vadd.f32 %v423, %v423
    %v427 = vrcp.pop %v426
    %v428 = vmul.f32 %v425, %v427
    %v429 = vadd.f32 %v408, %v428
    %v430 = vsub.f32 %v324, %v429
    %v431 = vmax.f32 %v430, 0.0
    %v432 = vmul.f32 %v431, %v431
    %v433 = vrot.slane %v432, 4
    %v434 = vadd.f32 %v432, %v433
    %v435 = vrot.slane %v434, 2
    %v436 = vadd.f32 %v434, %v435
    %v437 = vrot.slane %v436, 1
    %v438 = vadd.f32 %v436, %v437
    %v439 = vrot.slane %v431, 4
    %v440 = vadd.f32 %v431, %v439
    %v441 = vrot.slane %v440, 2
    %v442 = vadd.f32 %v440, %v441
    %v443 = vrot.slane %v442, 1
    %v444 = vadd.f32 %v442, %v443
    %v445 = vsub.f32 %v438, 1.0
    %v446 = vmax.f32 %v445, 0.0
    %v447 = vadd.f32 %v444, %v444
    %v448 = vrcp.pop %v447
    %v449 = vmul.f32 %v446, %v448
    %v450 = vadd.f32 %v429, %v449
    %v451 = vsub.f32 %v324, %v450
    %v452 = vmax.f32 %v451, 0.0
    %v453 = vmul.f32 %v452, %v452
    %v454 = vrot.slane %v453, 4
    %v455 = vadd.f32 %v453, %v454
    %v456 = vrot.slane %v455, 2
    %v457 = vadd.f32 %v455, %v456
    %v458 = vrot.slane %v457, 1
    %v459 = vadd.f32 %v457, %v458
    %v460 = vrot.slane %v452, 4
    %v461 = vadd.f32 %v452, %v460
    %v462 = vrot.slane %v461, 2
    %v463 = vadd.f32 %v461, %v462
    %v464 = vrot.slane %v463, 1
    %v465 = vadd.f32 %v463, %v464
    %v466 = vsub.f32 %v459, 1.0
    %v467 = vmax.f32 %v466, 0.0
    %v468 = vadd.f32 %v465, %v465
    %v469 = vrcp.pop %v468
    %v470 = vmul.f32 %v467, %v469
    %v471 = vadd.f32 %v450, %v470
    %v472 = vsub.f32 %v324, %v471
    %v473 = vmax.f32 %v472, 0.0
    %v474 = vmul.f32 %v473, %v473
    %v475 = vrot.slane %v474, 4
    %v476 = vadd.f32 %v474, %v475
    %v477 = vrot.slane %v476, 2
    %v478 = vadd.f32 %v476, %v477
    %v479 = vrot.slane %v478, 1
    %v480 = vadd.f32 %v478, %v479
    %v481 = vrot.slane %v473, 4
    %v482 = vadd.f32 %v473, %v481
    %v483 = vrot.slane %v482, 2
    %v484 = vadd.f32 %v482, %v483
    %v485 = vrot.slane %v484, 1
    %v486 = vadd.f32 %v484, %v485
    %v487 = vsub.f32 %v480, 1.0
    %v488 = vadd.f32 %v486, %v486
    %v489 = vrcp.pop %v488
    %v490 = vmul.f32 %v488, %v489
    %v491 = vsub.f32 1.0, %v490
    %v492 = vmul.f32 %v489, %v491
    %v493 = vadd.f32 %v489, %v492
    %vm494 = vweird.f32 %v488
    %vm495 = vweird.f32 %v489
    %vm496 = vmor %vm494, %vm495
    %v497 = vsel %vm496, %v489, %v493
    %v498 = vand.u32 2147483647, %v488
    %vm499 = vcmp.eq.f32.partialorder %v498, 8.507059e+37
    %v500 = vand.u32 %v488, 2147483648
    %v501 = vor.u32 1.1754944e-38, %v500
    %v502 = vsel %vm499, %v501, %v497
    %v503 = vmul.f32 %v487, %v502
    %v504 = vadd.f32 %v471, %v503
    %v505 = vsub.f32 %v324, %v504
    %v506 = vmax.f32 %v505, 0.0
    %v507 = vmul.f32 %v506, %v506
    %v508 = vrot.slane %v507, 4
    %v509 = vadd.f32 %v507, %v508
    %v510 = vrot.slane %v509, 2
    %v511 = vadd.f32 %v509, %v510
    %v512 = vrot.slane %v511, 1
    %v513 = vadd.f32 %v511, %v512
    %v514 = vrcp.pop %v513
    %v515 = vmul.f32 %v513, %v514
    %v516 = vsub.f32 1.0, %v515
    %v517 = vmul.f32 %v514, %v516
    %v518 = vadd.f32 %v514, %v517
    %vm519 = vweird.f32 %v513
    %vm520 = vweird.f32 %v514
    %vm521 = vmor %vm519, %vm520
    %v522 = vsel %vm521, %v514, %v518
    %v523 = vand.u32 2147483647, %v513
    %vm524 = vcmp.eq.f32.partialorder %v523, 8.507059e+37
    %v525 = vand.u32 %v513, 2147483648
    %v526 = vor.u32 1.1754944e-38, %v525
    %v527 = vsel %vm524, %v526, %v522
    %v528 = vmul.f32 %v507, %v527
    %529 = vst [vmem:[#allocation2] sm:$0xff] %v528
    // Predicated region
    $region30: #{tpu_custom_call.1} parent=1 // pred_check
      _
    $region31: #{tpu_custom_call.1} parent=1 // pred_check_branch
      %531 = sbr.rel (0) target = $region33
    $region32: #{tpu_custom_call.1} parent=1 // pred_region
      %533 = vsyncadd [#allocation3], 0
      %s535 = sshll.u32 [#allocation2], 4
      %s536 = int_to_ptr.vmem [resolvable:$true] %s535
      %s537 = sshll.u32 %s7, 4
      %s538 = int_to_ptr.hbm [resolvable:$true] %s537
      %540 = dma.vmem_to_hbm [thread:$0]  %s536, 128, %s538, [#allocation3]
    $region33: #{tpu_custom_call.1} parent=1 // pred_fallthru
      _
    // Predicated region
    $region34: #{tpu_custom_call.1} parent=1 // pred_check
      _
    $region35: #{tpu_custom_call.1} parent=1 // pred_check_branch
      %542 = sbr.rel (0) target = $region37
    $region36: #{tpu_custom_call.1} parent=1 // pred_region
      %544 = dma.done [#allocation3], 128
    $region37: #{tpu_custom_call.1} parent=1 // pred_fallthru
      _
    %545 = vsyncpa [#allocation3], 1

</llo_original>
